<compile_context>
chip_gen: v7x
topology: tpu7x:2x2x1
jax: 0.10.0
libtpu: 0.0.40
codegen_flags: <defaults>
</compile_context>

<pallas_src>
import functools

import jax
import jax.numpy as jnp
import numpy as np
from jax.experimental import pallas as pl
from jax.experimental.pallas import tpu as pltpu

_GATHER_MATMUL_MAX_CLASSES = 128   # use the one-hot@centers MXU gather up to here


# --------------------------------------------------------------------------- #
# Small static helpers
# --------------------------------------------------------------------------- #
def _powf_static(base, exponent: float):
    """base ** exponent (base >= 1) with a *static* exponent, EUP-frugal.

    exponent == 1            -> no-op
    integer exponent         -> exponentiation-by-squaring (VPU only)
    half-integer exponent    -> integer part * sqrt(base)   (1 EUP op)
    otherwise                -> exp(e * log(base))           (2 EUP ops)
    """
    exponent = float(exponent)
    if exponent == 1.0:
        return base
    twice = 2.0 * exponent
    if exponent > 0.0 and twice.is_integer() and twice <= 33.0:
        n = int(exponent)                       # integer part
        has_half = (int(twice) % 2) == 1        # trailing 0.5
        out = jnp.sqrt(base) if has_half else None
        sq, k = base, n
        while k:
            if k & 1:
                out = sq if out is None else out * sq
            k >>= 1
            if k:
                sq = sq * sq
        return out if out is not None else jnp.ones_like(base)
    return jnp.exp(exponent * jnp.log(base))


def _pow_eup_ops(exponent: float) -> int:
    """Transcendentals per element used by _powf_static (for CostEstimate)."""
    exponent = float(exponent)
    if exponent == 1.0:
        return 0
    twice = 2.0 * exponent
    if exponent > 0.0 and twice.is_integer() and twice <= 33.0:
        return 0 if (int(twice) % 2) == 0 else 1
    return 2


def _vmem_capacity_bytes() -> int:
    try:
        return int(pltpu.get_tpu_info().vmem_capacity_bytes)
    except Exception:                     # query unavailable -> assume v7x-sized VMEM
        return 64 << 20


def _choose_tile_b(batch: int, dim: int, itemsize: int, vmem_bytes: int) -> int:
    """Batch-tile rows: packing-aligned, VMEM-budgeted, megacore-friendly."""
    sub = max(8, 32 // max(1, itemsize))          # f32: 8, bf16: 16, int8/fp8: 32
    if batch <= sub:
        return batch                               # single full block (layout-legal)
    # ~1/16 of VMEM per hidden tile (the pipeline double-buffers it; the
    # pre-gathered-c_y path streams a second tile of the same size).
    budget = min(8 << 20, max(2 << 20, vmem_bytes // 16))
    tb = budget // max(1, dim * itemsize)
    tb = max(sub, min(1024, (tb // sub) * sub))
    # Keep >= 2 grid steps so the "parallel" batch axis can shard across the
    # two TensorCores on v7x; the ragged tail is masked in-kernel.
    half = (((batch + 1) // 2) + sub - 1) // sub * sub
    return min(tb, max(sub, half))


def _vmem_limit_bytes(tile_b, dim, num_classes, itemsize, weight_by_prob,
                      gather_in_kernel, vmem_cap) -> int:
    f32 = 4
    need = 2 * tile_b * dim * itemsize             # hidden tile, double-buffered
    need += 2 * tile_b * 128 * f32                 # y tile (lane-padded), dbl-buffered
    need += tile_b * dim * f32                     # f32 working copy of the tile
    if weight_by_prob:
        need += num_classes * dim * itemsize       # resident centers (single buffer)
        need += 8 * max(num_classes, 128) * f32    # resident ||c||^2 row (padded)
        need += 3 * tile_b * num_classes * f32     # dist / q / onehot temporaries
    elif gather_in_kernel:
        need += num_classes * dim * itemsize       # resident centers
        need += tile_b * num_classes * f32 + tile_b * dim * f32
    else:
        need += 2 * tile_b * dim * itemsize        # streamed c_y tile, dbl-buffered
    need += 8 << 20                                # compiler scratch / pipeline slack
    need = max(need, 32 << 20)
    return int(min(need, max(vmem_cap - (8 << 20), 32 << 20)))


def _resident_spec(shape, single_buffer: bool) -> pl.BlockSpec:
    index_map = lambda i: (0,) * len(shape)
    if single_buffer:
        # Constant index map -> one buffer suffices; halves the resident VMEM
        # footprint of the centers table (biggest payoff on v7x's 64 MiB VMEM).
        return pl.BlockSpec(shape, index_map, pipeline_mode=pl.Buffered(1))
    return pl.BlockSpec(shape, index_map)


# --------------------------------------------------------------------------- #
# Kernels (one batch tile per grid step; each writes a masked partial sum)
# --------------------------------------------------------------------------- #
def _valid_rows(tb: int, tile_b: int, true_b: int):
    row_ids = jax.lax.broadcasted_iota(jnp.int32, (tb, 1), 0)
    return (pl.program_id(0) * tile_b + row_ids) < true_b


def _center_loss_weighted_kernel(y_ref, h_ref, c_ref, csq_ref, partial_ref, *,
                                 alpha: float, true_b: int, tile_b: int,
                                 matmul_dtype):
    h = h_ref[...]                                      # (TB, D)
    c = c_ref[...]                                      # (C, D)
    y = y_ref[...]                                      # (TB, 1) int32
    csq = csq_ref[...]                                  # (1, C) f32, hoisted to wrapper

    tb, _ = h.shape
    num_classes = c.shape[0]
    h32 = h.astype(jnp.float32)

    if matmul_dtype is not None:                        # optional bf16 MXU path (v5e)
        h_mm, c_mm = h.astype(matmul_dtype), c.astype(matmul_dtype)
    else:
        h_mm, c_mm = h, c

    # dist = ||h||^2 + ||c||^2 - 2 h c^T, with h c^T on the MXU.
    hc = jax.lax.dot_general(h_mm, c_mm, (((1,), (1,)), ((), ())),
                             preferred_element_type=jnp.float32)       # (TB, C)
    hh = jnp.sum(h32 * h32, axis=-1, keepdims=True)                    # (TB, 1)
    dist = jnp.maximum(hh + csq - 2.0 * hc, 0.0)                       # (TB, C)

    # Labeled (intra-class) distance via a one-hot masked row reduce.
    class_ids = jax.lax.broadcasted_iota(jnp.int32, (tb, num_classes), 1)
    onehot_f = (class_ids == y).astype(jnp.float32)
    intra = jnp.sum(dist * onehot_f, axis=-1, keepdims=True)           # (TB, 1)

    # Student-t weighting q = (1 + d/alpha)^((alpha+1)/2); q_y derived directly
    # from intra (no second (TB,C) masked reduce).
    exponent = (alpha + 1.0) / 2.0
    inv_alpha = 1.0 / alpha
    q = _powf_static(1.0 + dist * inv_alpha, exponent)                 # (TB, C)
    q_sum = jnp.sum(q, axis=-1, keepdims=True)                         # (TB, 1)
    q_y = _powf_static(1.0 + intra * inv_alpha, exponent)              # (TB, 1)
    # (TB,1) divide -- negligible; full-precision kept over pl.reciprocal(approx).
    contrib = intra * (q_y / q_sum)

    valid = _valid_rows(tb, tile_b, true_b)
    partial_ref[0, 0] = jnp.sum(jnp.where(valid, contrib, 0.0))


def _center_loss_gather_kernel(y_ref, h_ref, c_ref, partial_ref, *,
                               true_b: int, tile_b: int, matmul_dtype):
    """Unweighted path, small C: gather the labeled centroid with one MXU matmul."""
    h = h_ref[...]                                      # (TB, D)
    c = c_ref[...]                                      # (C, D)
    y = y_ref[...]                                      # (TB, 1) int32
    tb = h.shape[0]
    num_classes = c.shape[0]

    class_ids = jax.lax.broadcasted_iota(jnp.int32, (tb, num_classes), 1)
    onehot = class_ids == y
    mm_dtype = matmul_dtype if matmul_dtype is not None else c.dtype
    c_y = jnp.dot(onehot.astype(mm_dtype), c.astype(mm_dtype),
                  preferred_element_type=jnp.float32)                  # (TB, D)

    diff = h.astype(jnp.float32) - c_y
    contrib = jnp.sum(diff * diff, axis=-1, keepdims=True)             # (TB, 1)

    valid = _valid_rows(tb, tile_b, true_b)
    partial_ref[0, 0] = jnp.sum(jnp.where(valid, contrib, 0.0))


def _center_loss_pregather_kernel(h_ref, cy_ref, partial_ref, *,
                                  true_b: int, tile_b: int):
    """Unweighted path, large C: labeled centroid pre-gathered in the wrapper."""
    diff = h_ref[...].astype(jnp.float32) - cy_ref[...].astype(jnp.float32)
    contrib = jnp.sum(diff * diff, axis=-1, keepdims=True)             # (TB, 1)
    tb = diff.shape[0]
    valid = _valid_rows(tb, tile_b, true_b)
    partial_ref[0, 0] = jnp.sum(jnp.where(valid, contrib, 0.0))


# --------------------------------------------------------------------------- #
# Wrapper
# --------------------------------------------------------------------------- #
def center_loss(y, hidden, centers, *, lambda_c: float = 1.0, alpha: float = 1.0,
                weight_by_prob: bool = False, tile_b: int | None = None,
                matmul_dtype=None, gather_in_kernel: bool | None = None):
    """Pallas TPU implementation of CenterLoss.forward.

    y:       (B,)   integer class labels
    hidden:  (B, D) float representations
    centers: (C, D) float class centroids (buffer)
    returns: scalar f32 loss
    """
    B, D = hidden.shape
    C, D2 = centers.shape
    assert D == D2, "hidden / centers dim mismatch"

    # Normalize dtypes so the MXU mode is predictable (mixed native dtypes into
    # dot_general may mis-lower or silently promote).
    centers = centers.astype(hidden.dtype)
    itemsize = hidden.dtype.itemsize
    vmem_cap = _vmem_capacity_bytes()
    weight_by_prob = bool(weight_by_prob)

    if tile_b is None:
        tile_b = _choose_tile_b(B, D, itemsize, vmem_cap)
        if weight_by_prob:
            # Keep the (TB, C) f32 distance / q temporaries within ~1/4 of VMEM.
            cap = max(8, ((vmem_cap // 4) // max(1, 12 * C)) // 8 * 8)
            tile_b = min(tile_b, cap)
    tile_b = min(int(tile_b), B)
    if tile_b < B:
        tile_b = max(8, ((tile_b + 7) // 8) * 8)        # sublane-legal block rows
        if tile_b >= B:
            tile_b = B
    grid_b = pl.cdiv(B, tile_b)

    if gather_in_kernel is None:
        gather_in_kernel = C <= _GATHER_MATMUL_MAX_CLASSES

    y_i32 = y.astype(jnp.int32).reshape(B, 1)
    hidden_spec = pl.BlockSpec((tile_b, D), lambda i: (i, 0))
    y_spec = pl.BlockSpec((tile_b, 1), lambda i: (i, 0))

    if weight_by_prob:
        # TODO(synk): for very large class tables (C*D approaching ~1/4 of VMEM,
        # especially v7x's 64 MiB), add a class-tiled "arbitrary" grid axis that
        # accumulates partial q_sum / intra instead of keeping centers resident.
        c32 = centers.astype(jnp.float32)
        c_sq = jnp.sum(c32 * c32, axis=-1).reshape(1, C)        # hoisted once
        kernel = functools.partial(
            _center_loss_weighted_kernel, alpha=float(alpha), true_b=B,
            tile_b=tile_b, matmul_dtype=matmul_dtype)
        args = (y_i32, hidden, centers, c_sq)

        def make_specs(single_buffer):
            return [y_spec, hidden_spec,
                    _resident_spec((C, D), single_buffer),
                    _resident_spec((1, C), single_buffer)]

        eup = _pow_eup_ops((float(alpha) + 1.0) / 2.0)
        flops = 2 * B * C * D + 4 * B * D + 10 * B * C
        transcendentals = eup * (B * C + B)
        bytes_accessed = (B * D + C * D) * itemsize + C * 4 + B * 4 + grid_b * 4
    elif gather_in_kernel:
        kernel = functools.partial(
            _center_loss_gather_kernel, true_b=B, tile_b=tile_b,
            matmul_dtype=matmul_dtype)
        args = (y_i32, hidden, centers)

        def make_specs(single_buffer):
            return [y_spec, hidden_spec, _resident_spec((C, D), single_buffer)]

        flops = 2 * B * C * D + 3 * B * D
        transcendentals = 0
        bytes_accessed = (B * D + C * D) * itemsize + B * 4 + grid_b * 4
    else:
        # Large class count: pre-gather the labeled centroid with an XLA gather
        # and stream it; the kernel becomes a pure O(B*D) HBM-bound pass.
        c_y = jnp.take(centers, y_i32[:, 0], axis=0)            # (B, D)
        kernel = functools.partial(
            _center_loss_pregather_kernel, true_b=B, tile_b=tile_b)
        args = (hidden, c_y)

        def make_specs(single_buffer):
            del single_buffer
            return [hidden_spec, pl.BlockSpec((tile_b, D), lambda i: (i, 0))]

        flops = 3 * B * D
        transcendentals = 0
        bytes_accessed = 2 * B * D * itemsize + grid_b * 4

    cost = pl.CostEstimate(flops=flops, transcendentals=transcendentals,
                           bytes_accessed=bytes_accessed)
    vmem_limit = _vmem_limit_bytes(tile_b, D, C, itemsize, weight_by_prob,
                                   gather_in_kernel, vmem_cap)

    def _run(single_buffer_resident: bool):
        return pl.pallas_call(
            kernel,
            out_shape=jax.ShapeDtypeStruct((grid_b, 1), jnp.float32),
            grid=(grid_b,),
            in_specs=make_specs(single_buffer_resident),
            out_specs=pl.BlockSpec((1, 1), lambda i: (i, 0),
                                   memory_space=pltpu.MemorySpace.SMEM),
            compiler_params=pltpu.CompilerParams(
                dimension_semantics=("parallel",),
                vmem_limit_bytes=vmem_limit),
            cost_estimate=cost,
        )(*args)

    try:
        partials = _run(True)          # single-buffered resident centers / ||c||^2
    except Exception:                  # older jax without pipeline_mode=Buffered(1)
        partials = _run(False)

    return (0.5 * float(lambda_c) / B) * jnp.sum(partials)


# --------------------------------------------------------------------------- #
# Pure-JAX reference (mirrors the PyTorch module) + self-test
# --------------------------------------------------------------------------- #
def _reference_center_loss(y, hidden, centers, *, lambda_c=1.0, alpha=1.0,
                           weight_by_prob=False):
    diff = hidden[:, None, :].astype(jnp.float32) - centers[None, :, :].astype(jnp.float32)
    dist = jnp.sum(diff * diff, axis=-1)                     # (B, C)
    intra = jnp.take_along_axis(dist, y[:, None], axis=1)[:, 0]
    if weight_by_prob:
        q = 1.0 / (1.0 + dist / alpha)
        q = q ** (-1.0 * (alpha + 1.0) / 2.0)
        q = q / jnp.sum(q, axis=1, keepdims=True)
        prob = jnp.take_along_axis(q, y[:, None], axis=1)[:, 0]
        return 0.5 * lambda_c * jnp.mean(intra * prob)
    return 0.5 * lambda_c * jnp.mean(intra)


if __name__ == "__main__":
    # Small deterministic shapes consistent with the module:
    #   batch=8, dim_hidden=32, num_classes=4
    B, D, C = 8, 32, 4
    key = jax.random.PRNGKey(0)
    k_h, k_c, k_y = jax.random.split(key, 3)

    hidden = jax.random.normal(k_h, (B, D), dtype=jnp.float32)
    # The PyTorch buffer inits to zeros; use deterministic random centers so the
    # distance / gather paths are exercised non-trivially.
    centers = jax.random.normal(k_c, (C, D), dtype=jnp.float32)
    y = jax.random.randint(k_y, (B,), 0, C, dtype=jnp.int32)

    failures = []

    def check(name, got, ref):
        if not np.allclose(np.asarray(got), np.asarray(ref), rtol=1e-4, atol=1e-5):
            failures.append(name)
            print(f"MISMATCH {name}: kernel={got} ref={ref}")

    cases = [
        dict(weight_by_prob=False, alpha=1.0),
        dict(weight_by_prob=True, alpha=1.0),    # exponent == 1   -> 0 EUP ops
        dict(weight_by_prob=True, alpha=2.0),    # exponent == 1.5 -> sqrt only
        dict(weight_by_prob=True, alpha=3.0),    # exponent == 2   -> VPU squares
        dict(weight_by_prob=True, alpha=0.75),   # exp/log fallback
    ]
    for cfg in cases:
        got = jax.block_until_ready(
            center_loss(y, hidden, centers, lambda_c=1.0, **cfg))
        ref = _reference_center_loss(y, hidden, centers, lambda_c=1.0, **cfg)
        check(str(cfg), got, ref)

    # Multi-tile + ragged-batch path (B=40 with 16-row tiles).
    B2 = 40
    k_h2, k_y2 = jax.random.split(jax.random.PRNGKey(1), 2)
    hidden2 = jax.random.normal(k_h2, (B2, D), dtype=jnp.float32)
    y2 = jax.random.randint(k_y2, (B2,), 0, C, dtype=jnp.int32)
    for wbp in (False, True):
        got = jax.block_until_ready(
            center_loss(y2, hidden2, centers, weight_by_prob=wbp, tile_b=16))
        ref = _reference_center_loss(y2, hidden2, centers, weight_by_prob=wbp)
        check(f"tiled weight_by_prob={wbp}", got, ref)

    # Pre-gathered-c_y streaming path (as used automatically for large C).
    got = jax.block_until_ready(
        center_loss(y2, hidden2, centers, weight_by_prob=False,
                    gather_in_kernel=False))
    ref = _reference_center_loss(y2, hidden2, centers, weight_by_prob=False)
    check("pre-gathered c_y path", got, ref)

    if not failures:
        print("KERNEL_OK")
</pallas_src>

<mosaic_0001>
module attributes {stable_mosaic.version = 11 : i64} {
  func.func @_center_loss_gather_kernel(%arg0: i32, %arg1: memref<8x1xi32, #tpu.memory_space<vmem>>, %arg2: memref<8x32xf32, #tpu.memory_space<vmem>>, %arg3: memref<4x32xf32, #tpu.memory_space<vmem>>, %arg4: memref<1x1xf32, #tpu.memory_space<smem>>) attributes {dimension_semantics = [#tpu.dimension_semantics<parallel>], iteration_bounds = array<i64: 1>, scalar_prefetch = 0 : i64, scratch_operands = 0 : i64, tpu.core_type = #tpu.core_type<tc>, window_params = [{transform_indices = @transform_0, window_bounds = array<i64: 8, 1>}, {transform_indices = @transform_1, window_bounds = array<i64: 8, 32>}, {pipeline_mode = #tpu.pipeline_mode<synchronous>, transform_indices = @transform_2, window_bounds = array<i64: 4, 32>}, {transform_indices = @transform_3, window_bounds = array<i64: 1, 1>}]} {
    %c0 = arith.constant 0 : index
    %c0_0 = arith.constant 0 : index
    %0 = vector.load %arg2[%c0, %c0_0] : memref<8x32xf32, #tpu.memory_space<vmem>>, vector<8x32xf32>
    %c0_1 = arith.constant 0 : index
    %c0_2 = arith.constant 0 : index
    %1 = vector.load %arg3[%c0_1, %c0_2] : memref<4x32xf32, #tpu.memory_space<vmem>>, vector<4x32xf32>
    %c0_3 = arith.constant 0 : index
    %c0_4 = arith.constant 0 : index
    %2 = vector.load %arg1[%c0_3, %c0_4] : memref<8x1xi32, #tpu.memory_space<vmem>>, vector<8x1xi32>
    %3 = tpu.iota {dimensions = array<i32: 1>} : vector<8x4xi32>
    %4 = vector.broadcast %2 : vector<8x1xi32> to vector<8x4xi32>
    %5 = arith.cmpi eq, %3, %4 : vector<8x4xi32>
    %6 = arith.extui %5 : vector<8x4xi1> to vector<8x4xi32>
    %7 = arith.sitofp %6 : vector<8x4xi32> to vector<8x4xf32>
    %cst = arith.constant dense<0.000000e+00> : vector<8x32xf32>
    %8 = tpu.matmul %7, %1, %cst {dimension_numbers = #tpu.dot_dimension_numbers<[1], [0], [0], [1], [0, 0, 1, 1], [], []>} : vector<8x4xf32>, vector<4x32xf32>, vector<8x32xf32> -> vector<8x32xf32>
    %9 = arith.subf %0, %8 : vector<8x32xf32>
    %10 = arith.mulf %9, %9 : vector<8x32xf32>
    %cst_5 = arith.constant dense<0.000000e+00> : vector<8xf32>
    %11 = vector.multi_reduction <add>, %10, %cst_5 [1] : vector<8x32xf32> to vector<8xf32>
    %12 = vector.shape_cast %11 : vector<8xf32> to vector<8x1xf32>
    %13 = tpu.iota {dimensions = array<i32: 0>} : vector<8x1xi32>
    %c8_i32 = arith.constant 8 : i32
    %14 = arith.muli %arg0, %c8_i32 : i32
    %15 = vector.broadcast %14 : i32 to vector<8x1xi32>
    %16 = arith.addi %15, %13 : vector<8x1xi32>
    %c8_i32_6 = arith.constant 8 : i32
    %17 = vector.broadcast %c8_i32_6 : i32 to vector<8x1xi32>
    %18 = arith.cmpi slt, %16, %17 : vector<8x1xi32>
    %cst_7 = arith.constant 0.000000e+00 : f32
    %19 = vector.broadcast %cst_7 : f32 to vector<8x1xf32>
    %20 = arith.select %18, %12, %19 : vector<8x1xi1>, vector<8x1xf32>
    %21 = vector.shape_cast %20 : vector<8x1xf32> to vector<1x8x1xf32>
    %cst_8 = arith.constant dense<0.000000e+00> : vector<1xf32>
    %22 = vector.multi_reduction <add>, %21, %cst_8 [1, 2] : vector<1x8x1xf32> to vector<1xf32>
    %23 = vector.shape_cast %22 : vector<1xf32> to vector<1x1x1xf32>
    %24 = vector.extract %23[0, 0, 0] : f32 from vector<1x1x1xf32>
    %c0_9 = arith.constant 0 : index
    %c0_10 = arith.constant 0 : index
    %25 = memref.load %arg4[%c0_9, %c0_10] : memref<1x1xf32, #tpu.memory_space<smem>>
    memref.store %24, %arg4[%c0_9, %c0_10] : memref<1x1xf32, #tpu.memory_space<smem>>
    return
  }
  func.func @transform_0(%arg0: i32) -> (i32, i32) {
    %c0_i32 = arith.constant 0 : i32
    %c0_i32_0 = arith.constant 0 : i32
    return %arg0, %c0_i32 : i32, i32
  }
  func.func @transform_1(%arg0: i32) -> (i32, i32) {
    %c0_i32 = arith.constant 0 : i32
    %c0_i32_0 = arith.constant 0 : i32
    return %arg0, %c0_i32 : i32, i32
  }
  func.func @transform_2(%arg0: i32) -> (i32, i32) {
    %c0_i32 = arith.constant 0 : i32
    %c0_i32_0 = arith.constant 0 : i32
    %c0_i32_1 = arith.constant 0 : i32
    return %c0_i32, %c0_i32_0 : i32, i32
  }
  func.func @transform_3(%arg0: i32) -> (i32, i32) {
    %c0_i32 = arith.constant 0 : i32
    %c0_i32_0 = arith.constant 0 : i32
    return %arg0, %c0_i32 : i32, i32
  }
}

module attributes {stable_mosaic.version = 11 : i64} {
  func.func @_center_loss_gather_kernel(%arg0: i32, %arg1: memref<8x1xi32, #tpu.memory_space<vmem>>, %arg2: memref<8x32xf32, #tpu.memory_space<vmem>>, %arg3: memref<4x32xf32, #tpu.memory_space<vmem>>, %arg4: memref<1x1xf32, #tpu.memory_space<smem>>) attributes {dimension_semantics = [#tpu.dimension_semantics<parallel>], iteration_bounds = array<i64: 1>, scalar_prefetch = 0 : i64, scratch_operands = 0 : i64, tpu.core_type = #tpu.core_type<tc>, window_params = [{transform_indices = @transform_0, window_bounds = array<i64: 8, 1>}, {transform_indices = @transform_1, window_bounds = array<i64: 8, 32>}, {pipeline_mode = #tpu.pipeline_mode<synchronous>, transform_indices = @transform_2, window_bounds = array<i64: 4, 32>}, {transform_indices = @transform_3, window_bounds = array<i64: 1, 1>}]} {
    %c0 = arith.constant 0 : index
    %c0_0 = arith.constant 0 : index
    %0 = vector.load %arg2[%c0, %c0_0] : memref<8x32xf32, #tpu.memory_space<vmem>>, vector<8x32xf32>
    %c0_1 = arith.constant 0 : index
    %c0_2 = arith.constant 0 : index
    %1 = vector.load %arg3[%c0_1, %c0_2] : memref<4x32xf32, #tpu.memory_space<vmem>>, vector<4x32xf32>
    %c0_3 = arith.constant 0 : index
    %c0_4 = arith.constant 0 : index
    %2 = vector.load %arg1[%c0_3, %c0_4] : memref<8x1xi32, #tpu.memory_space<vmem>>, vector<8x1xi32>
    %3 = tpu.iota {dimensions = array<i32: 1>} : vector<8x4xi32>
    %4 = vector.broadcast %2 : vector<8x1xi32> to vector<8x4xi32>
    %5 = arith.cmpi eq, %3, %4 : vector<8x4xi32>
    %6 = arith.extui %5 : vector<8x4xi1> to vector<8x4xi32>
    %7 = arith.sitofp %6 : vector<8x4xi32> to vector<8x4xf32>
    %cst = arith.constant dense<0.000000e+00> : vector<8x32xf32>
    %8 = tpu.matmul %7, %1, %cst {dimension_numbers = #tpu.dot_dimension_numbers<[1], [0], [0], [1], [0, 0, 1, 1], [], []>} : vector<8x4xf32>, vector<4x32xf32>, vector<8x32xf32> -> vector<8x32xf32>
    %9 = arith.subf %0, %8 : vector<8x32xf32>
    %10 = arith.mulf %9, %9 : vector<8x32xf32>
    %cst_5 = arith.constant dense<0.000000e+00> : vector<8xf32>
    %11 = vector.multi_reduction <add>, %10, %cst_5 [1] : vector<8x32xf32> to vector<8xf32>
    %12 = vector.shape_cast %11 : vector<8xf32> to vector<8x1xf32>
    %13 = tpu.iota {dimensions = array<i32: 0>} : vector<8x1xi32>
    %c8_i32 = arith.constant 8 : i32
    %14 = arith.muli %arg0, %c8_i32 : i32
    %15 = vector.broadcast %14 : i32 to vector<8x1xi32>
    %16 = arith.addi %15, %13 : vector<8x1xi32>
    %c8_i32_6 = arith.constant 8 : i32
    %17 = vector.broadcast %c8_i32_6 : i32 to vector<8x1xi32>
    %18 = arith.cmpi slt, %16, %17 : vector<8x1xi32>
    %cst_7 = arith.constant 0.000000e+00 : f32
    %19 = vector.broadcast %cst_7 : f32 to vector<8x1xf32>
    %20 = arith.select %18, %12, %19 : vector<8x1xi1>, vector<8x1xf32>
    %21 = vector.shape_cast %20 : vector<8x1xf32> to vector<1x8x1xf32>
    %cst_8 = arith.constant dense<0.000000e+00> : vector<1xf32>
    %22 = vector.multi_reduction <add>, %21, %cst_8 [1, 2] : vector<1x8x1xf32> to vector<1xf32>
    %23 = vector.shape_cast %22 : vector<1xf32> to vector<1x1x1xf32>
    %24 = vector.extract %23[0, 0, 0] : f32 from vector<1x1x1xf32>
    %c0_9 = arith.constant 0 : index
    %c0_10 = arith.constant 0 : index
    %25 = memref.load %arg4[%c0_9, %c0_10] : memref<1x1xf32, #tpu.memory_space<smem>>
    memref.store %24, %arg4[%c0_9, %c0_10] : memref<1x1xf32, #tpu.memory_space<smem>>
    return
  }
  func.func @transform_0(%arg0: i32) -> (i32, i32) {
    %c0_i32 = arith.constant 0 : i32
    %c0_i32_0 = arith.constant 0 : i32
    return %arg0, %c0_i32 : i32, i32
  }
  func.func @transform_1(%arg0: i32) -> (i32, i32) {
    %c0_i32 = arith.constant 0 : i32
    %c0_i32_0 = arith.constant 0 : i32
    return %arg0, %c0_i32 : i32, i32
  }
  func.func @transform_2(%arg0: i32) -> (i32, i32) {
    %c0_i32 = arith.constant 0 : i32
    %c0_i32_0 = arith.constant 0 : i32
    %c0_i32_1 = arith.constant 0 : i32
    return %c0_i32, %c0_i32_0 : i32, i32
  }
  func.func @transform_3(%arg0: i32) -> (i32, i32) {
    %c0_i32 = arith.constant 0 : i32
    %c0_i32_0 = arith.constant 0 : i32
    return %arg0, %c0_i32 : i32, i32
  }
}

</mosaic_0001>

<llo_original>
// kernel: tpu_custom_call.1
$region0: #{tpu_custom_call.1}
  #allocation0 [shape = 'u32[]', space=smem, size = 0x4, offset = 0x4, fixed_abs, tag = 'smem constant byte address 0x4 - core index']
  #allocation1 [shape = 'u32[144,128]{1,0:T(1,128)}', space=vmem, size = 0x12000, scoped, tag = 'internal scratch']
  %s0 = inlined_call_operand.vmem [shape: s32[8,1], index: 0, kind: input, shape index: {}]
  %s1 = inlined_call_operand.vmem [shape: f32[8,32], index: 1, kind: input, shape index: {}]
  %s2 = inlined_call_operand.vmem [shape: f32[4,32], index: 2, kind: input, shape index: {}]
  %s3 = inlined_call_operand.hbm [shape: f32[1,1], index: 3, kind: output, shape index: {}]
  %s4 = sld [smem:[#allocation0]]
  $region22: #{tpu_custom_call.1} parent=0
    _
  %s6 = ssub.s32 1, %s4
  %s7 = scalar_select 0, %s6, %s4
  $region1: #{tpu_custom_call.1} parent=0
    #allocation2 [shape = 'u8[512]{0}', space=smem, size = 0x200, scoped, tag = 'output window, operand 0, single buffered']
    #allocation3 [shape = 's32[1]{0}', space=sflag, size = 0x4, scoped, tag = 'scoped memory for tpu_custom_call.1']
    %8 = vsyncpa [#allocation3], 0
    // Predicated region
    $region2: #{tpu_custom_call.1} parent=1 // pred_check
      _
    $region3: #{tpu_custom_call.1} parent=1 // pred_check_branch
      %10 = sbr.rel (0) target = $region5
    $region4: #{tpu_custom_call.1} parent=1 // pred_region
      _
    $region5: #{tpu_custom_call.1} parent=1 // pred_fallthru
      _
    // Predicated region
    $region6: #{tpu_custom_call.1} parent=1 // pred_check
      _
    $region7: #{tpu_custom_call.1} parent=1 // pred_check_branch
      %12 = sbr.rel (0) target = $region9
    $region8: #{tpu_custom_call.1} parent=1 // pred_region
      _
    $region9: #{tpu_custom_call.1} parent=1 // pred_fallthru
      _
    // Predicated region
    $region10: #{tpu_custom_call.1} parent=1 // pred_check
      _
    $region11: #{tpu_custom_call.1} parent=1 // pred_check_branch
      %14 = sbr.rel (0) target = $region13
    $region12: #{tpu_custom_call.1} parent=1 // pred_region
      _
    $region13: #{tpu_custom_call.1} parent=1 // pred_fallthru
      _
    %v15 = vld [vmem:[%s1] sm:$0xff]
    %v16 = vld [vmem:[%s2] sm:$0xf]
    %v17 = vld [vmem:[%s0] sm:$0xff]
    %v18 = vlaneseq
    %v19 = vand.u32 %v18, 127
    %20 = vset.pattern.permute.xlu0 0
    %21 = vperm.xlu0 %20, %v17
    %v22 = vpop.permute.xlu0 %21
    %vm23 = vcmp.eq.s32.totalorder %v19, %v22
    %v24 = vsel %vm23, 1, 0
    %v25 = vcvt.s32.f32 %v24
    %vm26 = vcmask 31744
    %v28 = vsel %vm26, %v25, 0
    %vm30 = vcmask 1043456
    %v32 = vsel %vm30, %v16, 0
    %34 = vmatprep.subr.mxu0 0.0
    %35 = vmatpush1.msra.mxu0 %v32
    %36 = vmatprep.subr.mxu0 0.0
    %37 = vmatpush1.msra.mxu0 0.0
    %38 = vmatprep.subr.mxu0 0.0
    %39 = vmatpush1.msra.mxu0 0.0
    %40 = vmatprep.subr.mxu0 0.0
    %41 = vmatpush1.msra.mxu0 0.0
    %42 = vmatprep.subr.mxu0 0.0
    %43 = vmatpush1.msra.mxu0 0.0
    %44 = vmatprep.subr.mxu0 0.0
    %45 = vmatpush1.msra.mxu0 0.0
    %46 = vmatprep.subr.mxu0 0.0
    %47 = vmatpush1.msra.mxu0 0.0
    %48 = vmatprep.subr.mxu0 0.0
    %49 = vmatpush1.msra.mxu0 0.0
    %50 = vmatprep.subr.mxu0 0.0
    %51 = vmatpush1.msra.mxu0 0.0
    %52 = vmatprep.subr.mxu0 0.0
    %53 = vmatpush1.msra.mxu0 0.0
    %54 = vmatprep.subr.mxu0 0.0
    %55 = vmatpush1.msra.mxu0 0.0
    %56 = vmatprep.subr.mxu0 0.0
    %57 = vmatpush1.msra.mxu0 0.0
    %58 = vmatprep.subr.mxu0 0.0
    %59 = vmatpush1.msra.mxu0 0.0
    %60 = vmatprep.subr.mxu0 0.0
    %61 = vmatpush1.msra.mxu0 0.0
    %62 = vmatprep.subr.mxu0 0.0
    %63 = vmatpush1.msra.mxu0 0.0
    %64 = vmatprep.subr.mxu0 0.0
    %65 = vmatpush1.msra.mxu0 0.0
    %66 = vmatprep.subr.mxu0 0.0
    %67 = vmatpush1.msra.mxu0 0.0
    %68 = vmatprep.subr.mxu0 0.0
    %69 = vmatpush1.msra.mxu0 0.0
    %70 = vmatprep.subr.mxu0 0.0
    %71 = vmatpush1.msra.mxu0 0.0
    %72 = vmatprep.subr.mxu0 0.0
    %73 = vmatpush1.msra.mxu0 0.0
    %74 = vmatprep.subr.mxu0 0.0
    %75 = vmatpush1.msra.mxu0 0.0
    %76 = vmatprep.subr.mxu0 0.0
    %77 = vmatpush1.msra.mxu0 0.0
    %78 = vmatprep.subr.mxu0 0.0
    %79 = vmatpush1.msra.mxu0 0.0
    %80 = vmatprep.subr.mxu0 0.0
    %81 = vmatpush1.msra.mxu0 0.0
    %82 = vmatprep.subr.mxu0 0.0
    %83 = vmatpush1.msra.mxu0 0.0
    %84 = vmatprep.subr.mxu0 0.0
    %85 = vmatpush1.msra.mxu0 0.0
    %86 = vmatprep.subr.mxu0 0.0
    %87 = vmatpush1.msra.mxu0 0.0
    %88 = vmatprep.subr.mxu0 0.0
    %89 = vmatpush1.msra.mxu0 0.0
    %90 = vmatprep.subr.mxu0 0.0
    %91 = vmatpush1.msra.mxu0 0.0
    %92 = vmatprep.subr.mxu0 0.0
    %93 = vmatpush1.msra.mxu0 0.0
    %94 = vmatprep.subr.mxu0 0.0
    %95 = vmatpush1.msra.mxu0 0.0
    %96 = vmatprep.subr.mxu0 0.0
    %97 = vmatpush1.msra.mxu0 0.0
    %98 = vmatprep.mubr.f32.mxu0 0.0
    %99 = vmatmul.mubr.f32.gmra.mrb[0].mxu0 %v28
    %v100 = vpop.f32.mrb[0].mxu0
    %v101 = vadd.f32 0.0, %v100
    %v102 = vpop.f32.mrb[0].mxu0
    %103 = vdwg.mxu0
    %v104 = vsub.f32 %v15, %v101
    %v105 = vmul.f32 %v104, %v104
    %vm106 = vcmask 261120
    %v107 = vsel %vm106, %v105, 0.0
    %108 = vadd.xlane.f32.xlu0 %v107
    %v109 = vpop.xlane.xlu0 %108
    %v110 = vlaneseq
    %v111 = vshrl.u32 %v110, 7
    %s112 = smul.u32 0, 8
    %v113 = vstv %s112
    %v114 = vadd.s32 %v113, %v111
    %vm115 = vcmp.lt.s32.totalorder %v114, 8
    %v116 = vsel %vm115, %v109, 0.0
    %vm117 = vcmask 7168
    %v118 = vsel %vm117, %v116, 0.0
    %119 = vadd.xlane.f32.xlu0 %v118
    %v120 = vpop.xlane.xlu0 %119
    %v121 = vrot.slane %v120, 4
    %v122 = vadd.f32 %v120, %v121
    %v123 = vrot.slane %v122, 2
    %v124 = vadd.f32 %v122, %v123
    %v125 = vrot.slane %v124, 1
    %v126 = vadd.f32 %v124, %v125
    %s127 = vtos %v126
    %s128 = scalar_lea.smem [#allocation2], 0
    %129 = sst [smem:[%s128]] %s127
    // Predicated region
    $region14: #{tpu_custom_call.1} parent=1 // pred_check
      _
    $region15: #{tpu_custom_call.1} parent=1 // pred_check_branch
      %131 = sbr.rel (0) target = $region17
    $region16: #{tpu_custom_call.1} parent=1 // pred_region
      %s133 = ssub.s32 16, 16
      %134 = vsyncadd [#allocation3], %s133
      %137 = dma.smem_to_hbm [#allocation2], 16, %s3, [#allocation3]
    $region17: #{tpu_custom_call.1} parent=1 // pred_fallthru
      _
    // Predicated region
    $region18: #{tpu_custom_call.1} parent=1 // pred_check
      _
    $region19: #{tpu_custom_call.1} parent=1 // pred_check_branch
      %139 = sbr.rel (0) target = $region21
    $region20: #{tpu_custom_call.1} parent=1 // pred_region
      %140 = dma.done [#allocation3], 16
    $region21: #{tpu_custom_call.1} parent=1 // pred_fallthru
      _
    %141 = sfence
    %142 = vsyncpa [#allocation3], 1

// kernel: tpu_custom_call.1
$region0: #{tpu_custom_call.1}
  #allocation0 [shape = 'u32[]', space=smem, size = 0x4, offset = 0x4, fixed_abs, tag = 'smem constant byte address 0x4 - core index']
  #allocation1 [shape = 'u32[144,128]{1,0:T(1,128)}', space=vmem, size = 0x12000, scoped, tag = 'internal scratch']
  %s0 = inlined_call_operand.vmem [shape: s32[8,1], index: 0, kind: input, shape index: {}]
  %s1 = inlined_call_operand.vmem [shape: f32[8,32], index: 1, kind: input, shape index: {}]
  %s2 = inlined_call_operand.vmem [shape: f32[4,32], index: 2, kind: input, shape index: {}]
  %s3 = inlined_call_operand.hbm [shape: f32[1,1], index: 3, kind: output, shape index: {}]
  %s4 = sld [smem:[#allocation0]]
  $region22: #{tpu_custom_call.1} parent=0
    _
  %s6 = ssub.s32 1, %s4
  %s7 = scalar_select 0, %s6, %s4
  $region1: #{tpu_custom_call.1} parent=0
    #allocation2 [shape = 'u8[512]{0}', space=smem, size = 0x200, scoped, tag = 'output window, operand 0, single buffered']
    #allocation3 [shape = 's32[1]{0}', space=sflag, size = 0x4, scoped, tag = 'scoped memory for tpu_custom_call.1']
    %8 = vsyncpa [#allocation3], 0
    // Predicated region
    $region2: #{tpu_custom_call.1} parent=1 // pred_check
      _
    $region3: #{tpu_custom_call.1} parent=1 // pred_check_branch
      %10 = sbr.rel (0) target = $region5
    $region4: #{tpu_custom_call.1} parent=1 // pred_region
      _
    $region5: #{tpu_custom_call.1} parent=1 // pred_fallthru
      _
    // Predicated region
    $region6: #{tpu_custom_call.1} parent=1 // pred_check
      _
    $region7: #{tpu_custom_call.1} parent=1 // pred_check_branch
      %12 = sbr.rel (0) target = $region9
    $region8: #{tpu_custom_call.1} parent=1 // pred_region
      _
    $region9: #{tpu_custom_call.1} parent=1 // pred_fallthru
      _
    // Predicated region
    $region10: #{tpu_custom_call.1} parent=1 // pred_check
      _
    $region11: #{tpu_custom_call.1} parent=1 // pred_check_branch
      %14 = sbr.rel (0) target = $region13
    $region12: #{tpu_custom_call.1} parent=1 // pred_region
      _
    $region13: #{tpu_custom_call.1} parent=1 // pred_fallthru
      _
    %v15 = vld [vmem:[%s1] sm:$0xff]
    %v16 = vld [vmem:[%s2] sm:$0xf]
    %v17 = vld [vmem:[%s0] sm:$0xff]
    %v18 = vlaneseq
    %v19 = vand.u32 %v18, 127
    %20 = vset.pattern.permute.xlu0 0
    %21 = vperm.xlu0 %20, %v17
    %v22 = vpop.permute.xlu0 %21
    %vm23 = vcmp.eq.s32.totalorder %v19, %v22
    %v24 = vsel %vm23, 1, 0
    %v25 = vcvt.s32.f32 %v24
    %vm26 = vcmask 31744
    %v28 = vsel %vm26, %v25, 0
    %vm30 = vcmask 1043456
    %v32 = vsel %vm30, %v16, 0
    %34 = vmatprep.subr.mxu0 0.0
    %35 = vmatpush1.msra.mxu0 %v32
    %36 = vmatprep.subr.mxu0 0.0
    %37 = vmatpush1.msra.mxu0 0.0
    %38 = vmatprep.subr.mxu0 0.0
    %39 = vmatpush1.msra.mxu0 0.0
    %40 = vmatprep.subr.mxu0 0.0
    %41 = vmatpush1.msra.mxu0 0.0
    %42 = vmatprep.subr.mxu0 0.0
    %43 = vmatpush1.msra.mxu0 0.0
    %44 = vmatprep.subr.mxu0 0.0
    %45 = vmatpush1.msra.mxu0 0.0
    %46 = vmatprep.subr.mxu0 0.0
    %47 = vmatpush1.msra.mxu0 0.0
    %48 = vmatprep.subr.mxu0 0.0
    %49 = vmatpush1.msra.mxu0 0.0
    %50 = vmatprep.subr.mxu0 0.0
    %51 = vmatpush1.msra.mxu0 0.0
    %52 = vmatprep.subr.mxu0 0.0
    %53 = vmatpush1.msra.mxu0 0.0
    %54 = vmatprep.subr.mxu0 0.0
    %55 = vmatpush1.msra.mxu0 0.0
    %56 = vmatprep.subr.mxu0 0.0
    %57 = vmatpush1.msra.mxu0 0.0
    %58 = vmatprep.subr.mxu0 0.0
    %59 = vmatpush1.msra.mxu0 0.0
    %60 = vmatprep.subr.mxu0 0.0
    %61 = vmatpush1.msra.mxu0 0.0
    %62 = vmatprep.subr.mxu0 0.0
    %63 = vmatpush1.msra.mxu0 0.0
    %64 = vmatprep.subr.mxu0 0.0
    %65 = vmatpush1.msra.mxu0 0.0
    %66 = vmatprep.subr.mxu0 0.0
    %67 = vmatpush1.msra.mxu0 0.0
    %68 = vmatprep.subr.mxu0 0.0
    %69 = vmatpush1.msra.mxu0 0.0
    %70 = vmatprep.subr.mxu0 0.0
    %71 = vmatpush1.msra.mxu0 0.0
    %72 = vmatprep.subr.mxu0 0.0
    %73 = vmatpush1.msra.mxu0 0.0
    %74 = vmatprep.subr.mxu0 0.0
    %75 = vmatpush1.msra.mxu0 0.0
    %76 = vmatprep.subr.mxu0 0.0
    %77 = vmatpush1.msra.mxu0 0.0
    %78 = vmatprep.subr.mxu0 0.0
    %79 = vmatpush1.msra.mxu0 0.0
    %80 = vmatprep.subr.mxu0 0.0
    %81 = vmatpush1.msra.mxu0 0.0
    %82 = vmatprep.subr.mxu0 0.0
    %83 = vmatpush1.msra.mxu0 0.0
    %84 = vmatprep.subr.mxu0 0.0
    %85 = vmatpush1.msra.mxu0 0.0
    %86 = vmatprep.subr.mxu0 0.0
    %87 = vmatpush1.msra.mxu0 0.0
    %88 = vmatprep.subr.mxu0 0.0
    %89 = vmatpush1.msra.mxu0 0.0
    %90 = vmatprep.subr.mxu0 0.0
    %91 = vmatpush1.msra.mxu0 0.0
    %92 = vmatprep.subr.mxu0 0.0
    %93 = vmatpush1.msra.mxu0 0.0
    %94 = vmatprep.subr.mxu0 0.0
    %95 = vmatpush1.msra.mxu0 0.0
    %96 = vmatprep.subr.mxu0 0.0
    %97 = vmatpush1.msra.mxu0 0.0
    %98 = vmatprep.mubr.f32.mxu0 0.0
    %99 = vmatmul.mubr.f32.gmra.mrb[0].mxu0 %v28
    %v100 = vpop.f32.mrb[0].mxu0
    %v101 = vadd.f32 0.0, %v100
    %v102 = vpop.f32.mrb[0].mxu0
    %103 = vdwg.mxu0
    %v104 = vsub.f32 %v15, %v101
    %v105 = vmul.f32 %v104, %v104
    %vm106 = vcmask 261120
    %v107 = vsel %vm106, %v105, 0.0
    %108 = vadd.xlane.f32.xlu0 %v107
    %v109 = vpop.xlane.xlu0 %108
    %v110 = vlaneseq
    %v111 = vshrl.u32 %v110, 7
    %s112 = smul.u32 0, 8
    %v113 = vstv %s112
    %v114 = vadd.s32 %v113, %v111
    %vm115 = vcmp.lt.s32.totalorder %v114, 8
    %v116 = vsel %vm115, %v109, 0.0
    %vm117 = vcmask 7168
    %v118 = vsel %vm117, %v116, 0.0
    %119 = vadd.xlane.f32.xlu0 %v118
    %v120 = vpop.xlane.xlu0 %119
    %v121 = vrot.slane %v120, 4
    %v122 = vadd.f32 %v120, %v121
    %v123 = vrot.slane %v122, 2
    %v124 = vadd.f32 %v122, %v123
    %v125 = vrot.slane %v124, 1
    %v126 = vadd.f32 %v124, %v125
    %s127 = vtos %v126
    %s128 = scalar_lea.smem [#allocation2], 0
    %129 = sst [smem:[%s128]] %s127
    // Predicated region
    $region14: #{tpu_custom_call.1} parent=1 // pred_check
      _
    $region15: #{tpu_custom_call.1} parent=1 // pred_check_branch
      %131 = sbr.rel (0) target = $region17
    $region16: #{tpu_custom_call.1} parent=1 // pred_region
      %s133 = ssub.s32 16, 16
      %134 = vsyncadd [#allocation3], %s133
      %137 = dma.smem_to_hbm [#allocation2], 16, %s3, [#allocation3]
    $region17: #{tpu_custom_call.1} parent=1 // pred_fallthru
      _
    // Predicated region
    $region18: #{tpu_custom_call.1} parent=1 // pred_check
      _
    $region19: #{tpu_custom_call.1} parent=1 // pred_check_branch
      %139 = sbr.rel (0) target = $region21
    $region20: #{tpu_custom_call.1} parent=1 // pred_region
      %140 = dma.done [#allocation3], 16
    $region21: #{tpu_custom_call.1} parent=1 // pred_fallthru
      _
    %141 = sfence
    %142 = vsyncpa [#allocation3], 1

</llo_original>
